<compile_context>
chip_gen: v6e
topology: v6e:2x2x1
jax: 0.10.0
libtpu: 0.0.40
codegen_flags: <defaults>
</compile_context>

<pallas_src>
import functools

import numpy as np
import jax
import jax.numpy as jnp
from jax.experimental import pallas as pl
from jax.experimental.pallas import tpu as pltpu


def _effective_K(kernel_size):
    K = kernel_size - 1
    if kernel_size % 2 == 0:
        K += 1
    return K  # matches Morlet_fast.__init__


def _round_up(x, m):
    return (x + m - 1) // m * m


def _cdiv(a, b):
    return -(-a // b)


def _morlet_conv_kernel(x_ref, wb_ref, o_ref, *, OUT_TILE, IN_TILE,
                        CH_PER_STEP, W_TILE):
    """One grid step = (batch tile n, out-channel c, length tile j).

    x_ref : VMEM (B_TILE, LIN)           zero-padded signal rows; block index is
                                         constant across (c, j) so it is DMA'd
                                         once per batch tile and stays resident.
    wb_ref: VMEM (1, IN_TILE, OUT_TILE)  banded-Toeplitz Morlet filter, channel c
    o_ref : VMEM (B_TILE, W_TILE)        output lanes of channel c, length tile j
    """
    j = pl.program_id(2)
    wb = wb_ref[0]                       # (IN_TILE, OUT_TILE); hoisted, loaded once
    base = j * W_TILE                    # output-lane / padded-input base of tile j
    # Small static chunk loop: each iteration's (B, 128) MXU result is stored
    # immediately, so nothing stays live across iterations (no accumulator
    # spills); the real length-axis chunking is the j grid axis.
    for q in range(CH_PER_STEP):
        t0 = pl.multiple_of(base + q * OUT_TILE, OUT_TILE)
        xw = x_ref[:, pl.ds(t0, IN_TILE)]                # lane-aligned (B, IN_TILE)
        o_ref[:, q * OUT_TILE:(q + 1) * OUT_TILE] = jnp.dot(
            xw, wb, preferred_element_type=jnp.float32)  # MXU banded matmul


def morlet_fast_forward(waveforms, a_, b_, kernel_size):
    """Pallas implementation of Morlet_fast.forward.

    waveforms: (N, 1, L) float32
    a_, b_:    (C, 1) float32 parameters
    returns:   (N, C, L + 2 - K + 1) float32   (conv1d, stride=1, padding=1)
    """
    N, in_ch, L = waveforms.shape
    if in_ch != 1:
        raise ValueError("Morlet_fast only supports one input channel")
    C = int(a_.shape[0])
    K = _effective_K(kernel_size)
    L_out = L + 2 - K + 1
    if L_out < 1:
        raise ValueError("kernel longer than padded input")

    OUT_TILE = 128                    # output lanes per MXU matmul
    HALO = 128                        # extra input lanes per window (>= K-1)
    IN_TILE = OUT_TILE + HALO         # banded-matmul contraction width
    if K - 1 > HALO:
        # TODO(synk): widen HALO (in multiples of 128) for very long wavelets.
        raise NotImplementedError("effective kernel size > 129 not supported")

    # --- Morlet filter bank (C, K): batch-invariant, built once in plain JAX ---
    half = K // 2
    t_right = jnp.linspace(0.0, K / 2.0 - 1.0, half, dtype=jnp.float32)
    t_left = jnp.linspace(-(K / 2.0) + 1.0, -1.0, half, dtype=jnp.float32)
    shift = (b_ / (a_ + 1e-8)).astype(jnp.float32)          # (C, 1)
    c0 = np.pi ** 0.25

    def _morlet(p):
        return c0 * jnp.exp(-(p * p) / 2.0) * jnp.cos(2.0 * np.pi * p)

    filt = jnp.concatenate(
        [_morlet(t_left[None, :] - shift), _morlet(t_right[None, :] - shift)],
        axis=1,
    ).astype(jnp.float32)                                   # (C, K)

    # --- banded-Toeplitz MXU weights (one band per channel), built once:
    #     out[t0 + j] = sum_i xpad[t0 + i] * Wb[c, i, j],
    #     Wb[c, i, j] = filt[c, i - j] if 0 <= i - j < K else 0
    ii = jnp.arange(IN_TILE)[:, None]
    jj = jnp.arange(OUT_TILE)[None, :]
    dd = ii - jj
    band = (dd >= 0) & (dd < K)
    wb = jnp.where(band[None, :, :],
                   filt[:, jnp.clip(dd, 0, K - 1)],
                   0.0).astype(jnp.float32)                 # (C, IN_TILE, OUT_TILE)

    # --- batch tiling: multiple of 8, divides the 8-rounded batch (<=7 junk
    #     rows), capped so the double-buffered full-length input block stays
    #     inside an explicit VMEM budget (v7x has only 64 MiB physical VMEM) ---
    n_chunks = _cdiv(L_out, OUT_TILE)
    lin_upper = _round_up(L_out, OUT_TILE) + 17 * OUT_TILE  # upper bound on LIN
    IN_VMEM_BUDGET = 24 << 20
    bt_cap = min(128, max(8, (IN_VMEM_BUDGET // (2 * 4 * lin_upper)) // 8 * 8))
    Np = _round_up(N, 8)
    units = Np // 8
    B_TILE = 8 * max(d for d in range(1, units + 1)
                     if units % d == 0 and 8 * d <= bt_cap)

    # --- length tiling: aim for ~0.5-2 MiB output blocks so the ~0.35 us/step
    #     overhead and DMA setup amortise (block size decoupled from the
    #     register-level chunking, which is the inner q loop) ---
    CH_PER_STEP = int(max(1, min(n_chunks, 16,
                                 (2 << 20) // (B_TILE * OUT_TILE * 4))))
    n_wsteps = _cdiv(n_chunks, CH_PER_STEP)
    W_TILE = CH_PER_STEP * OUT_TILE
    W_pad = n_wsteps * W_TILE
    LIN = W_pad + HALO                # padded-signal width seen by the kernel

    # conv1d padding=1 (one left zero) + right zero-fill + batch padding, all in
    # a single fused pad; every window the kernel reads is then lane-aligned.
    x2d = waveforms[:, 0, :].astype(jnp.float32)
    x_pad = jnp.pad(x2d, ((0, Np - N), (1, LIN - L - 1)))   # (Np, LIN)

    grid = (Np // B_TILE, C, n_wsteps)
    kernel = functools.partial(_morlet_conv_kernel, OUT_TILE=OUT_TILE,
                               IN_TILE=IN_TILE, CH_PER_STEP=CH_PER_STEP,
                               W_TILE=W_TILE)

    out_pad = pl.pallas_call(
        kernel,
        out_shape=jax.ShapeDtypeStruct((Np, C * W_pad), jnp.float32),
        grid=grid,
        in_specs=[
            # full padded row-slab; index constant across (c, j) => one DMA per
            # batch tile, then reused from VMEM for every channel / length tile
            pl.BlockSpec((B_TILE, LIN), lambda n, c, j: (n, 0)),
            # per-channel banded filter (small; re-fetched only when c changes)
            pl.BlockSpec((1, IN_TILE, OUT_TILE), lambda n, c, j: (c, 0, 0)),
        ],
        # lane-dense output slab: channel c / length-tile j occupies lanes
        # [(c*n_wsteps + j)*W_TILE, ...) -> full-width, unmasked, aligned stores
        out_specs=pl.BlockSpec((B_TILE, W_TILE),
                               lambda n, c, j: (n, c * n_wsteps + j)),
        compiler_params=pltpu.CompilerParams(
            dimension_semantics=("parallel", "parallel", "parallel"),
            vmem_limit_bytes=48 * 1024 * 1024,
        ),
    )(x_pad, wb)

    # (Np, C*W_pad) -> (Np, C, W_pad) is a free row-major reshape; the crop is a
    # single XLA slice -- jit this wrapper together with its consumer to fuse it.
    return out_pad.reshape(Np, C, W_pad)[:N, :, :L_out]


def morlet_fast_reference(waveforms, a_, b_, kernel_size):
    """Pure-JAX reference mirroring the PyTorch module (for validation)."""
    K = _effective_K(kernel_size)
    half = K // 2
    t_right = jnp.linspace(0.0, K / 2.0 - 1.0, half)
    t_left = jnp.linspace(-(K / 2.0) + 1.0, -1.0, half)
    shift = b_ / (a_ + 1e-8)
    c0 = np.pi ** 0.25

    def morlet(p):
        return c0 * jnp.exp(-(p ** 2) / 2.0) * jnp.cos(2.0 * np.pi * p)

    filt = jnp.concatenate(
        [morlet(t_left[None, :] - shift), morlet(t_right[None, :] - shift)],
        axis=1,
    ).reshape(a_.shape[0], 1, K)
    return jax.lax.conv_general_dilated(
        waveforms, filt, window_strides=(1,), padding=[(1, 1)],
        dimension_numbers=("NCH", "OIH", "NCH"),
    )


if __name__ == "__main__":
    # Small shapes consistent with the module: batch=2, in_channels=1, L=32,
    # out_channels=4, kernel_size=16 (effective K=16, output length 19).
    N, L = 2, 32
    out_channels, kernel_size = 4, 16

    key = jax.random.PRNGKey(0)
    waveforms = jax.random.normal(key, (N, 1, L), dtype=jnp.float32)

    # Deterministic parameter init, exactly like Morlet_fast.__init__
    a_ = jnp.linspace(1.0, 10.0, out_channels, dtype=jnp.float32).reshape(-1, 1)
    b_ = jnp.linspace(0.0, 10.0, out_channels, dtype=jnp.float32).reshape(-1, 1)

    out = jax.block_until_ready(morlet_fast_forward(waveforms, a_, b_, kernel_size))
    ref = jax.block_until_ready(morlet_fast_reference(waveforms, a_, b_, kernel_size))

    K = _effective_K(kernel_size)
    assert out.shape == (N, out_channels, L + 2 - K + 1), out.shape
    np.testing.assert_allclose(np.asarray(out), np.asarray(ref),
                               rtol=1e-4, atol=1e-4)
    print("KERNEL_OK")
</pallas_src>

<mosaic_0001>
module attributes {stable_mosaic.version = 11 : i64} {
  func.func @_morlet_conv_kernel(%arg0: i32, %arg1: i32, %arg2: i32, %arg3: memref<8x256xf32, #tpu.memory_space<vmem>>, %arg4: memref<1x256x128xf32, #tpu.memory_space<vmem>>, %arg5: memref<8x128xf32, #tpu.memory_space<vmem>>) attributes {dimension_semantics = [#tpu.dimension_semantics<parallel>, #tpu.dimension_semantics<parallel>, #tpu.dimension_semantics<parallel>], iteration_bounds = array<i64: 1, 4, 1>, scalar_prefetch = 0 : i64, scratch_operands = 0 : i64, tpu.core_type = #tpu.core_type<tc>, window_params = [{transform_indices = @transform_0, window_bounds = array<i64: 8, 256>}, {transform_indices = @transform_1, window_bounds = array<i64: 1, 256, 128>}, {transform_indices = @transform_2, window_bounds = array<i64: 8, 128>}]} {
    %c0 = arith.constant 0 : index
    %c0_0 = arith.constant 0 : index
    %c0_1 = arith.constant 0 : index
    %0 = vector.load %arg4[%c0, %c0_0, %c0_1] : memref<1x256x128xf32, #tpu.memory_space<vmem>>, vector<1x256x128xf32>
    %1 = vector.shape_cast %0 : vector<1x256x128xf32> to vector<256x128xf32>
    %c128_i32 = arith.constant 128 : i32
    %2 = arith.muli %arg2, %c128_i32 : i32
    %c0_i32 = arith.constant 0 : i32
    %3 = arith.addi %2, %c0_i32 : i32
    %4 = tpu.assume_multiple %3, 128 : i32
    %c0_2 = arith.constant 0 : index
    %5 = arith.index_cast %4 : i32 to index
    %6 = vector.load %arg3[%c0_2, %5] : memref<8x256xf32, #tpu.memory_space<vmem>>, vector<8x256xf32>
    %cst = arith.constant dense<0.000000e+00> : vector<8x128xf32>
    %7 = tpu.matmul %6, %1, %cst {dimension_numbers = #tpu.dot_dimension_numbers<[1], [0], [0], [1], [0, 0, 1, 1], [], []>} : vector<8x256xf32>, vector<256x128xf32>, vector<8x128xf32> -> vector<8x128xf32>
    %c0_3 = arith.constant 0 : index
    %c0_4 = arith.constant 0 : index
    %8 = vector.load %arg5[%c0_3, %c0_4] : memref<8x128xf32, #tpu.memory_space<vmem>>, vector<8x128xf32>
    tpu.vector_store %arg5[%c0_3, %c0_4], %7 {strides = array<i32>} : memref<8x128xf32, #tpu.memory_space<vmem>>, vector<8x128xf32>,
    return
  }
  func.func @transform_0(%arg0: i32, %arg1: i32, %arg2: i32) -> (i32, i32) {
    %c0_i32 = arith.constant 0 : i32
    %c0_i32_0 = arith.constant 0 : i32
    return %arg0, %c0_i32 : i32, i32
  }
  func.func @transform_1(%arg0: i32, %arg1: i32, %arg2: i32) -> (i32, i32, i32) {
    %c0_i32 = arith.constant 0 : i32
    %c0_i32_0 = arith.constant 0 : i32
    %c0_i32_1 = arith.constant 0 : i32
    return %arg1, %c0_i32, %c0_i32_0 : i32, i32, i32
  }
  func.func @transform_2(%arg0: i32, %arg1: i32, %arg2: i32) -> (i32, i32) {
    %c1_i32 = arith.constant 1 : i32
    %0 = arith.muli %arg1, %c1_i32 : i32
    %1 = arith.addi %0, %arg2 : i32
    %c0_i32 = arith.constant 0 : i32
    return %arg0, %1 : i32, i32
  }
}

</mosaic_0001>

<llo_original>
// kernel: tpu_custom_call.1
$region0: #{tpu_custom_call.1}
  #allocation0 [shape = 'u32[]', space=smem, size = 0x4, offset = 0x4, fixed_abs, tag = 'smem constant byte address 0x4 - core index']
  #allocation1 [shape = 'u32[144,128]{1,0:T(1,128)}', space=vmem, size = 0x12000, scoped, tag = 'internal scratch']
  %s0 = inlined_call_operand.hbm [shape: f32[8,256], index: 0, kind: input, shape index: {}]
  %s1 = inlined_call_operand.hbm [shape: f32[4,256,128], index: 1, kind: input, shape index: {}]
  %s2 = inlined_call_operand.hbm [shape: f32[8,512], index: 2, kind: output, shape index: {}]
  %s3 = sld [smem:[#allocation0]]
  $region49: #{tpu_custom_call.1} parent=0
    _
  %s5 = ssub.s32 1, %s3
  %s6 = scalar_select 0, %s5, %s3
  $region1: #{tpu_custom_call.1} parent=0
    #allocation2 [shape = 'u8[8192]{0}', space=vmem, size = 0x2000, scoped, tag = 'input window, operand 0, single buffered']
    #allocation3 [shape = 's32[2]{0}', space=sflag, size = 0x8, scoped, tag = 'scoped memory for tpu_custom_call.1']
    #allocation4 [shape = 's32[2]{0}', space=sflag, size = 0x8, scoped, tag = 'scoped memory for tpu_custom_call.1']
    #allocation5 [shape = 'u8[262144]{0}', space=vmem, size = 0x40000, scoped, tag = 'input window, operand 1']
    #allocation6 [shape = 's32[2]{0}', space=sflag, size = 0x8, scoped, tag = 'scoped memory for tpu_custom_call.1']
    #allocation7 [shape = 'u8[8192]{0}', space=vmem, size = 0x2000, scoped, tag = 'output window, operand 0']
    %7 = vsyncpa [#allocation3], 0
    %8 = vsyncpa [#allocation6], 0
    %s9 = scalar_lea.sflag [#allocation6], 1
    %10 = vsyncpa %s9, 0
    %11 = vsyncpa [#allocation4], 0
    %s12 = scalar_lea.sflag [#allocation4], 1
    %13 = vsyncpa %s12, 0
    loop: start=0, step=1, limit=6
    $region2: #{tpu_custom_call.1} parent=1 // loop_pre_header
      _
    $region3: #{tpu_custom_call.1} parent=1 // loop_header
      %s15 = sphi 0, %s19
      %p16 = scmp.ge.s32.totalorder %s15, 6
      %s22 = sphi 0, %s41
      %s23 = sphi 0, %s37
      %s24 = sphi 0, %s33
      %s25 = sphi 0, %s22
      %s26 = sphi 0, %s23
      %s27 = sphi 0, %s24
      %s28 = sphi 0, %s25
      %s29 = sphi 0, %s26
      %s30 = sphi 0, %s27
      %s44 = sphi 0, %s46
      %s47 = sphi 0, %s44
      %s48 = sphi 0, %s47
      %s64 = sphi 0, %s48
      %s70 = sphi 0, %s72
      %s73 = sphi 0, %s70
      %s74 = sphi 0, %s73
      %s90 = sphi 0, %s74
      %s100 = sphi 0, %s102
      %s103 = sphi 0, %s100
      %s104 = sphi 0, %s103
      %s120 = sphi 0, %s104
    $region4: #{tpu_custom_call.1} parent=1 // loop_header_branch
      %18 = sbr.rel (%p16) target = $region8
    $region5: #{tpu_custom_call.1} parent=1 // loop_body
      %s20 = ssub.s32 %s15, 1
      %s21 = ssub.s32 %s15, 2
      %s31 = sadd.s32 1, %s24
      %p32 = scmp.ge.s32.totalorder %s31, 1
      %s33 = scalar_select %p32, 0, %s31
      %s34 = sadd.s32 1, %s23
      %s35 = scalar_select %p32, %s34, %s23
      %p36 = scmp.ge.s32.totalorder %s35, 4
      %s37 = scalar_select %p36, 0, %s35
      %s38 = sadd.s32 1, %s22
      %s39 = scalar_select %p36, %s38, %s22
      %p40 = scmp.ge.s32.totalorder %s39, 1
      %s41 = scalar_select %p40, 0, %s39
      %s42 = ssub.s32 %s22, %s41
      %p43 = scmp.eq.s32.totalorder %s42, 0
      %s45 = sadd.s32 %s44, 1
      %s46 = scalar_select %p43, %s44, %s45
      %p49 = pneg %p43
      %p50 = scmp.eq.s32.totalorder %s15, 3
      %p51 = por %p49, %p50
      %p52 = scmp.ne.s32.totalorder %s44, %s47
      %p53 = scmp.eq.s32.totalorder %s15, 0
      %p54 = por %p52, %p53
      %p55 = scmp.ne.s32.totalorder %s44, %s47
      %p56 = scmp.eq.s32.totalorder %s20, 3
      %p57 = por %p55, %p56
      %p58 = scmp.ne.s32.totalorder %s47, %s48
      %p59 = scmp.eq.s32.totalorder %s20, 0
      %p60 = por %p58, %p59
      %p61 = scmp.ne.s32.totalorder %s47, %s48
      %p62 = scmp.eq.s32.totalorder %s21, 3
      %p63 = por %p61, %p62
      %p65 = scmp.ne.s32.totalorder %s48, %s64
      %p66 = scmp.eq.s32.totalorder %s21, 0
      %p67 = por %p65, %p66
      %s68 = ssub.s32 %s23, %s37
      %p69 = scmp.eq.s32.totalorder %s68, 0
      %s71 = sadd.s32 %s70, 1
      %s72 = scalar_select %p69, %s70, %s71
      %p75 = pneg %p69
      %p76 = scmp.eq.s32.totalorder %s15, 3
      %p77 = por %p75, %p76
      %p78 = scmp.ne.s32.totalorder %s70, %s73
      %p79 = scmp.eq.s32.totalorder %s15, 0
      %p80 = por %p78, %p79
      %p81 = scmp.ne.s32.totalorder %s70, %s73
      %p82 = scmp.eq.s32.totalorder %s20, 3
      %p83 = por %p81, %p82
      %p84 = scmp.ne.s32.totalorder %s73, %s74
      %p85 = scmp.eq.s32.totalorder %s20, 0
      %p86 = por %p84, %p85
      %p87 = scmp.ne.s32.totalorder %s73, %s74
      %p88 = scmp.eq.s32.totalorder %s21, 3
      %p89 = por %p87, %p88
      %p91 = scmp.ne.s32.totalorder %s74, %s90
      %p92 = scmp.eq.s32.totalorder %s21, 0
      %p93 = por %p91, %p92
      %s94 = sadd.s32 %s23, %s24
      %s95 = sadd.s32 %s37, %s33
      %s96 = ssub.s32 %s22, %s41
      %s97 = ssub.s32 %s94, %s95
      %s98 = sor.u32 %s96, %s97
      %p99 = scmp.eq.s32.totalorder %s98, 0
      %s101 = sadd.s32 %s100, 1
      %s102 = scalar_select %p99, %s100, %s101
      %p105 = pneg %p99
      %p106 = scmp.eq.s32.totalorder %s15, 3
      %p107 = por %p105, %p106
      %p108 = scmp.ne.s32.totalorder %s100, %s103
      %p109 = scmp.eq.s32.totalorder %s15, 0
      %p110 = por %p108, %p109
      %p111 = scmp.ne.s32.totalorder %s100, %s103
      %p112 = scmp.eq.s32.totalorder %s20, 3
      %p113 = por %p111, %p112
      %p114 = scmp.ne.s32.totalorder %s103, %s104
      %p115 = scmp.eq.s32.totalorder %s20, 0
      %p116 = por %p114, %p115
      %p117 = scmp.ne.s32.totalorder %s103, %s104
      %p118 = scmp.eq.s32.totalorder %s21, 3
      %p119 = por %p117, %p118
      %p121 = scmp.ne.s32.totalorder %s104, %s120
      %p122 = scmp.eq.s32.totalorder %s21, 0
      %p123 = por %p121, %p122
      %p124 = scmp.le.s32.totalorder 1, %s15
      %p125 = scmp.lt.s32.totalorder %s15, 5
      %p126 = pnand %p124, %p125
      %p127 = pneg %p126
      // Predicated region
      $region9: #{tpu_custom_call.1} parent=5 // pred_check
        _
      $region10: #{tpu_custom_call.1} parent=5 // pred_check_branch
        %129 = sbr.rel (%p126) target = $region12
      $region11: #{tpu_custom_call.1} parent=5 // pred_region
        %s130 = ssub.s32 %s15, 1
        // Predicated region
        $region13: #{tpu_custom_call.1} parent=11 // pred_check
          %p131 = pneg %p60
        $region14: #{tpu_custom_call.1} parent=11 // pred_check_branch
          %133 = sbr.rel (%p131) target = $region16
        $region15: #{tpu_custom_call.1} parent=11 // pred_region
          %s135 = ssub.s32 256, 256
          %136 = vsyncadd [#allocation3], %s135
          %s137 = smul.addr %s25, 2
          %s138 = smul.addr %s137, 128
          %s139 = scalar_lea.hbm %s0, %s138
          %s141 = sshll.u32 [#allocation2], 4
          %s142 = int_to_ptr.vmem [resolvable:$true] %s141
          %144 = dma.hbm_to_vmem [thread:$0]  %s139, 256, %s142, [#allocation3]
        $region16: #{tpu_custom_call.1} parent=11 // pred_fallthru
          _
      $region12: #{tpu_custom_call.1} parent=5 // pred_fallthru
        _
      %p145 = scmp.lt.s32.totalorder %s15, 4
      // Predicated region
      $region17: #{tpu_custom_call.1} parent=5 // pred_check
        %p146 = pneg %p145
      $region18: #{tpu_custom_call.1} parent=5 // pred_check_branch
        %148 = sbr.rel (%p146) target = $region20
      $region19: #{tpu_custom_call.1} parent=5 // pred_region
        // Predicated region
        $region21: #{tpu_custom_call.1} parent=19 // pred_check
          %p149 = pneg %p80
        $region22: #{tpu_custom_call.1} parent=19 // pred_check_branch
          %151 = sbr.rel (%p149) target = $region24
        $region23: #{tpu_custom_call.1} parent=19 // pred_region
          %s152 = sand.u32 %s70, 1
          %s153 = scalar_lea.sflag [#allocation6], %s152
          %s154 = sand.u32 %s70, 1
          %s155 = smul.addr %s154, 256
          %s156 = scalar_lea.vmem [#allocation5], %s155
          %s158 = ssub.s32 4096, 4096
          %159 = vsyncadd %s153, %s158
          %s160 = smul.addr %s23, 32
          %s161 = smul.addr %s160, 128
          %s162 = scalar_lea.hbm %s1, %s161
          %s163 = sshll.u32 %s156, 4
          %s164 = int_to_ptr.vmem [resolvable:$true] %s163
          %169 = dma.hbm_to_vmem [thread:$0]  %s162, 4096, %s164, %s153, 128, 128, 8
        $region24: #{tpu_custom_call.1} parent=19 // pred_fallthru
          _
      $region20: #{tpu_custom_call.1} parent=5 // pred_fallthru
        _
      %p170 = scmp.le.s32.totalorder 1, %s15
      %p171 = scmp.lt.s32.totalorder %s15, 5
      %p172 = pnand %p170, %p171
      %p173 = pneg %p172
      // Predicated region
      $region25: #{tpu_custom_call.1} parent=5 // pred_check
        _
      $region26: #{tpu_custom_call.1} parent=5 // pred_check_branch
        %175 = sbr.rel (%p172) target = $region28
      $region27: #{tpu_custom_call.1} parent=5 // pred_region
        %s176 = ssub.s32 %s15, 1
        // Predicated region
        $region29: #{tpu_custom_call.1} parent=27 // pred_check
          %p177 = pneg %p60
        $region30: #{tpu_custom_call.1} parent=27 // pred_check_branch
          %179 = sbr.rel (%p177) target = $region32
        $region31: #{tpu_custom_call.1} parent=27 // pred_region
          %180 = dma.done [#allocation3], 256
        $region32: #{tpu_custom_call.1} parent=27 // pred_fallthru
          _
        %s181 = sand.u32 %s73, 1
        %s182 = scalar_lea.sflag [#allocation6], %s181
        %s183 = sand.u32 %s73, 1
        %s184 = smul.addr %s183, 256
        %s185 = scalar_lea.vmem [#allocation5], %s184
        // Predicated region
        $region33: #{tpu_custom_call.1} parent=27 // pred_check
          %p186 = pneg %p86
        $region34: #{tpu_custom_call.1} parent=27 // pred_check_branch
          %188 = sbr.rel (%p186) target = $region36
        $region35: #{tpu_custom_call.1} parent=27 // pred_region
          %189 = dma.done %s182, 4096
        $region36: #{tpu_custom_call.1} parent=27 // pred_fallthru
          _
        %p190 = pneg %p60
        %p191 = pneg %p57
        %s192 = sand.u32 %s73, 1
        %s193 = scalar_lea.sflag [#allocation6], %s192
        %s194 = sand.u32 %s73, 1
        %s195 = smul.addr %s194, 256
        %s196 = scalar_lea.vmem [#allocation5], %s195
        %p197 = pneg %p86
        %p198 = pneg %p83
        %p199 = pneg %p116
        %p200 = pneg %p113
        %s201 = sand.u32 %s103, 1
        %s202 = scalar_lea.sflag [#allocation4], %s201
        %s203 = sand.u32 %s103, 1
        %s204 = smul.addr %s203, 8
        %s205 = scalar_lea.vmem [#allocation7], %s204
        %s206 = sadd.s32 %s26, %s27
        %v207 = vld [vmem:[%s185] sm:$0xff]
        %v208 = vld [vmem:[%s185 + $0x8] sm:$0xff]
        %v209 = vld [vmem:[%s185 + $0x10] sm:$0xff]
        %v210 = vld [vmem:[%s185 + $0x18] sm:$0xff]
        %v211 = vld [vmem:[%s185 + $0x20] sm:$0xff]
        %v212 = vld [vmem:[%s185 + $0x28] sm:$0xff]
        %v213 = vld [vmem:[%s185 + $0x30] sm:$0xff]
        %v214 = vld [vmem:[%s185 + $0x38] sm:$0xff]
        %v215 = vld [vmem:[%s185 + $0x40] sm:$0xff]
        %v216 = vld [vmem:[%s185 + $0x48] sm:$0xff]
        %v217 = vld [vmem:[%s185 + $0x50] sm:$0xff]
        %v218 = vld [vmem:[%s185 + $0x58] sm:$0xff]
        %v219 = vld [vmem:[%s185 + $0x60] sm:$0xff]
        %v220 = vld [vmem:[%s185 + $0x68] sm:$0xff]
        %v221 = vld [vmem:[%s185 + $0x70] sm:$0xff]
        %v222 = vld [vmem:[%s185 + $0x78] sm:$0xff]
        %v223 = vld [vmem:[%s185 + $0x80] sm:$0xff]
        %v224 = vld [vmem:[%s185 + $0x88] sm:$0xff]
        %v225 = vld [vmem:[%s185 + $0x90] sm:$0xff]
        %v226 = vld [vmem:[%s185 + $0x98] sm:$0xff]
        %v227 = vld [vmem:[%s185 + $0xa0] sm:$0xff]
        %v228 = vld [vmem:[%s185 + $0xa8] sm:$0xff]
        %v229 = vld [vmem:[%s185 + $0xb0] sm:$0xff]
        %v230 = vld [vmem:[%s185 + $0xb8] sm:$0xff]
        %v231 = vld [vmem:[%s185 + $0xc0] sm:$0xff]
        %v232 = vld [vmem:[%s185 + $0xc8] sm:$0xff]
        %v233 = vld [vmem:[%s185 + $0xd0] sm:$0xff]
        %v234 = vld [vmem:[%s185 + $0xd8] sm:$0xff]
        %v235 = vld [vmem:[%s185 + $0xe0] sm:$0xff]
        %v236 = vld [vmem:[%s185 + $0xe8] sm:$0xff]
        %v237 = vld [vmem:[%s185 + $0xf0] sm:$0xff]
        %v238 = vld [vmem:[%s185 + $0xf8] sm:$0xff]
        %s239 = smul.u32 %s27, 128
        %s240 = sshra.s32 %s239, 7
        %s241 = sand.u32 %s239, 127
        %s242 = smul.addr %s240, 8
        %s243 = scalar_lea.vmem [#allocation2], %s242
        %v244 = vld [vmem:[%s243] sm:$0xff]
        %v245 = vld [vmem:[%s243 + $0x8] sm:$0xff]
        %246 = vmatprep.subr.mxu0 0.0
        %247 = vmatpush1.msra.mxu0 %v222
        %248 = vmatprep.subr.mxu0 0.0
        %249 = vmatpush1.msra.mxu0 %v221
        %250 = vmatprep.subr.mxu0 0.0
        %251 = vmatpush1.msra.mxu0 %v220
        %252 = vmatprep.subr.mxu0 0.0
        %253 = vmatpush1.msra.mxu0 %v219
        %254 = vmatprep.subr.mxu0 0.0
        %255 = vmatpush1.msra.mxu0 %v218
        %256 = vmatprep.subr.mxu0 0.0
        %257 = vmatpush1.msra.mxu0 %v217
        %258 = vmatprep.subr.mxu0 0.0
        %259 = vmatpush1.msra.mxu0 %v216
        %260 = vmatprep.subr.mxu0 0.0
        %261 = vmatpush1.msra.mxu0 %v215
        %262 = vmatprep.subr.mxu0 0.0
        %263 = vmatpush1.msra.mxu0 %v214
        %264 = vmatprep.subr.mxu0 0.0
        %265 = vmatpush1.msra.mxu0 %v213
        %266 = vmatprep.subr.mxu0 0.0
        %267 = vmatpush1.msra.mxu0 %v212
        %268 = vmatprep.subr.mxu0 0.0
        %269 = vmatpush1.msra.mxu0 %v211
        %270 = vmatprep.subr.mxu0 0.0
        %271 = vmatpush1.msra.mxu0 %v210
        %272 = vmatprep.subr.mxu0 0.0
        %273 = vmatpush1.msra.mxu0 %v209
        %274 = vmatprep.subr.mxu0 0.0
        %275 = vmatpush1.msra.mxu0 %v208
        %276 = vmatprep.subr.mxu0 0.0
        %277 = vmatpush1.msra.mxu0 %v207
        %278 = vmatprep.subr.mxu0 0.0
        %279 = vmatpush2.msra.mxu0 %v238
        %280 = vmatprep.subr.mxu0 0.0
        %281 = vmatpush2.msra.mxu0 %v237
        %282 = vmatprep.subr.mxu0 0.0
        %283 = vmatpush2.msra.mxu0 %v236
        %284 = vmatprep.subr.mxu0 0.0
        %285 = vmatpush2.msra.mxu0 %v235
        %286 = vmatprep.subr.mxu0 0.0
        %287 = vmatpush2.msra.mxu0 %v234
        %288 = vmatprep.subr.mxu0 0.0
        %289 = vmatpush2.msra.mxu0 %v233
        %290 = vmatprep.subr.mxu0 0.0
        %291 = vmatpush2.msra.mxu0 %v232
        %292 = vmatprep.subr.mxu0 0.0
        %293 = vmatpush2.msra.mxu0 %v231
        %294 = vmatprep.subr.mxu0 0.0
        %295 = vmatpush2.msra.mxu0 %v230
        %296 = vmatprep.subr.mxu0 0.0
        %297 = vmatpush2.msra.mxu0 %v229
        %298 = vmatprep.subr.mxu0 0.0
        %299 = vmatpush2.msra.mxu0 %v228
        %300 = vmatprep.subr.mxu0 0.0
        %301 = vmatpush2.msra.mxu0 %v227
        %302 = vmatprep.subr.mxu0 0.0
        %303 = vmatpush2.msra.mxu0 %v226
        %304 = vmatprep.subr.mxu0 0.0
        %305 = vmatpush2.msra.mxu0 %v225
        %306 = vmatprep.subr.mxu0 0.0
        %307 = vmatpush2.msra.mxu0 %v224
        %308 = vmatprep.subr.mxu0 0.0
        %309 = vmatpush2.msra.mxu0 %v223
        %310 = vmatprep.mubr.f32.mxu0 %v245
        %311 = vmatmul.mubr.f32.gmra.mxu0 %v244
        %v312 = vpop.f32.mrf.mxu0
        %v313 = vadd.f32 0.0, %v312
        %v314 = vpop.f32.mrf.mxu0
        %315 = vdwg.mxu0
        %316 = vst [vmem:[%s205] sm:$0xff] %v313
        %s317 = sand.u32 %s103, 1
        %s318 = scalar_lea.sflag [#allocation4], %s317
        %s319 = sand.u32 %s103, 1
        %s320 = smul.addr %s319, 8
        %s321 = scalar_lea.vmem [#allocation7], %s320
        // Predicated region
        $region37: #{tpu_custom_call.1} parent=27 // pred_check
          %p322 = pneg %p113
        $region38: #{tpu_custom_call.1} parent=27 // pred_check_branch
          %324 = sbr.rel (%p322) target = $region40
        $region39: #{tpu_custom_call.1} parent=27 // pred_region
          %s325 = sadd.s32 %s26, %s27
          %s327 = ssub.s32 128, 128
          %328 = vsyncadd %s318, %s327
          %s329 = smul.addr %s25, 4
          %s330 = sadd.s32 %s325, %s329
          %s331 = smul.addr %s330, 128
          %s332 = scalar_lea.hbm %s2, %s331
          %s334 = sshll.u32 %s321, 4
          %s335 = int_to_ptr.vmem [resolvable:$true] %s334
          %337 = dma.vmem_to_hbm [thread:$0]  %s335, 128, %s332, %s318
        $region40: #{tpu_custom_call.1} parent=27 // pred_fallthru
          _
      $region28: #{tpu_custom_call.1} parent=5 // pred_fallthru
        _
      %p338 = scmp.le.s32.totalorder 2, %s15
      // Predicated region
      $region41: #{tpu_custom_call.1} parent=5 // pred_check
        %p339 = pneg %p338
      $region42: #{tpu_custom_call.1} parent=5 // pred_check_branch
        %341 = sbr.rel (%p339) target = $region44
      $region43: #{tpu_custom_call.1} parent=5 // pred_region
        %s342 = ssub.s32 %s15, 2
        // Predicated region
        $region45: #{tpu_custom_call.1} parent=43 // pred_check
          %p343 = pneg %p119
        $region46: #{tpu_custom_call.1} parent=43 // pred_check_branch
          %345 = sbr.rel (%p343) target = $region48
        $region47: #{tpu_custom_call.1} parent=43 // pred_region
          %s346 = sand.u32 %s104, 1
          %s347 = scalar_lea.sflag [#allocation4], %s346
          %s348 = sand.u32 %s104, 1
          %s349 = smul.addr %s348, 8
          %s350 = scalar_lea.vmem [#allocation7], %s349
          %351 = dma.done %s347, 128
        $region48: #{tpu_custom_call.1} parent=43 // pred_fallthru
          _
      $region44: #{tpu_custom_call.1} parent=5 // pred_fallthru
        _
    $region6: #{tpu_custom_call.1} parent=1 // loop_footer
      %s19 = sadd.s32 1, %s15
    $region7: #{tpu_custom_call.1} parent=1 // loop_footer_branch
      %14 = sbr.rel target = $region3
    $region8: #{tpu_custom_call.1} parent=1 // loop_exit
      _
    %352 = vsyncpa [#allocation3], 1
    %s353 = scalar_lea.sflag [#allocation3], 1
    %354 = vsyncpa %s353, 1
    %355 = vsyncpa [#allocation6], 1
    %s356 = scalar_lea.sflag [#allocation6], 1
    %357 = vsyncpa %s356, 1
    %358 = vsyncpa [#allocation4], 1
    %s359 = scalar_lea.sflag [#allocation4], 1
    %360 = vsyncpa %s359, 1

</llo_original>
